<compile_context>
chip_gen: v7x
topology: tpu7x:2x2x1
jax: 0.10.0
libtpu: 0.0.40
codegen_flags: <defaults>
</compile_context>

<pallas_src>
import functools

import jax
import jax.numpy as jnp
from jax.experimental import pallas as pl
from jax.experimental.pallas import tpu as pltpu


def _round_up(x, m):
    return (x + m - 1) // m * m


def _embed_pos_kernel(gid_ref, pid_ref, table_ref, pos_ref, out_ref, *, t_tile):
    """One grid step: gather t_tile rows (embedding + positional) directly.

    gid_ref:   (N_pad,)      int32  SMEM (scalar prefetch) - embedding row per output row
    pid_ref:   (N_pad,)      int32  SMEM (scalar prefetch) - position index per output row
    table_ref: (V_pad, E)    VMEM   embedding table (+ appended all-zeros row), resident
    pos_ref:   (P_pad, E)    VMEM   positional table, resident
    out_ref:   (t_tile, E)   VMEM   fused decoder_inputs rows
    """
    base = pl.program_id(0) * t_tile

    def body(i, carry):
        gid = gid_ref[base + i]                 # embedding row (or the zero "context" row)
        pid = pid_ref[base + i]                 # position index
        row = table_ref[pl.ds(gid, 1), :] + pos_ref[pl.ds(pid, 1), :]
        out_ref[pl.ds(i, 1), :] = row
        return carry

    jax.lax.fori_loop(0, t_tile, body, 0, unroll=t_tile <= 64)


def code_decoder_inputs(token_ids, embed_table, pos_table, *,
                        use_pallas=None, t_tile_max=256):
    """decoder_inputs of CodeModel.forward (eval mode):

        cat([zeros(B, 1, E), embed(code)], dim=1).transpose(0, 1) + pos_embed[:S+1]

    token_ids: (B, S) int; embed_table: (V, E); pos_table: (max_len, E)
    returns (S+1, B, E) in the embedding dtype.
    """
    B, S = token_ids.shape
    V, E = embed_table.shape
    P, Ep = pos_table.shape
    assert Ep == E, (Ep, E)
    L = S + 1
    assert L <= P, "sequence (incl. context token) exceeds positional table"
    dtype = embed_table.dtype
    N = L * B

    if use_pallas is None:
        use_pallas = N >= 1024   # below this the kernel would be pure launch overhead

    ids = jnp.clip(token_ids.astype(jnp.int32), 0, V - 1)              # (B, S)

    if not use_pallas:
        emb = jnp.take(embed_table, ids, axis=0)                        # (B, S, E)
        x = jnp.concatenate([jnp.zeros((B, 1, E), dtype), emb], axis=1)
        x = jnp.transpose(x, (1, 0, 2)) + pos_table[:L][:, None, :].astype(dtype)
        return x.astype(dtype)

    itemsize = jnp.dtype(dtype).itemsize
    row_align = 8 * 4 // itemsize          # sublane pack: 8 (f32), 16 (bf16), 32 (i8/fp8)

    # --- row flattening (seq-major): row r = t*B + b  ->  output (L, B, E) ---
    zero_row = V                                            # appended all-zeros table row
    gids = jnp.full((N,), zero_row, jnp.int32)              # t == 0 -> context (zeros)
    gids = gids.at[B:].set(ids.T.reshape(-1))               # t >= 1 -> code[b, t-1]
    pids = jnp.arange(N, dtype=jnp.int32) // B              # position index t

    # --- token tiling: sublane-pack-aligned row tiles ---
    n_pad_a = _round_up(N, row_align)
    t_tile = t_tile_max if n_pad_a >= t_tile_max else n_pad_a
    n_pad = _round_up(N, t_tile)
    gids = jnp.full((n_pad,), zero_row, jnp.int32).at[:N].set(gids)
    pids = jnp.zeros((n_pad,), jnp.int32).at[:N].set(pids)

    # --- VMEM-resident tables (zero row appended; rows padded to the pack) ---
    v_rows = _round_up(V + 1, row_align)
    table = jnp.zeros((v_rows, E), dtype).at[:V].set(embed_table)
    p_rows = _round_up(P, row_align)
    pos = jnp.zeros((p_rows, E), dtype).at[:P].set(pos_table.astype(dtype))

    grid = (n_pad // t_tile,)

    vmem_need = 2 * (v_rows * E + p_rows * E + t_tile * E) * itemsize + (1 << 20)
    vmem_limit = int(min(32 << 20, max(4 << 20, vmem_need)))

    grid_spec = pltpu.PrefetchScalarGridSpec(
        num_scalar_prefetch=2,                 # gids, pids -> SMEM
        grid=grid,
        in_specs=[
            # Whole embedding table, resident in VMEM; constant block index ->
            # DMA'd once, never re-streamed across token tiles.
            pl.BlockSpec((v_rows, E), lambda ti, g, p: (0, 0)),
            # Whole positional table, resident in VMEM.
            pl.BlockSpec((p_rows, E), lambda ti, g, p: (0, 0)),
        ],
        out_specs=pl.BlockSpec((t_tile, E), lambda ti, g, p: (ti, 0)),
    )

    out_flat = pl.pallas_call(
        functools.partial(_embed_pos_kernel, t_tile=t_tile),
        out_shape=jax.ShapeDtypeStruct((n_pad, E), dtype),
        grid_spec=grid_spec,
        compiler_params=pltpu.CompilerParams(
            dimension_semantics=("parallel",),
            vmem_limit_bytes=vmem_limit,
        ),
    )(gids, pids, table, pos)

    return out_flat[:N].reshape(L, B, E)


if __name__ == "__main__":
    # Shapes consistent with CodeModel: classes (vocab) = 512, max_len = 8,
    # embed_dim = 128.  seq = 7 so that seq + 1 (prepended context token) == max_len.
    vocab_size, d_model, max_len = 512, 128, 8
    batch, seq = 2, 7

    key = jax.random.PRNGKey(0)
    k_emb, k_pos, k_ids = jax.random.split(key, 3)

    # nn.Embedding default init: N(0, 1); kaiming_normal_(fan_in) for the pos table.
    embed_table = jax.random.normal(k_emb, (vocab_size, d_model), jnp.float32)
    pos_table = jax.random.normal(k_pos, (max_len, d_model), jnp.float32) * (2.0 / d_model) ** 0.5
    token_ids = jax.random.randint(k_ids, (batch, seq), 0, vocab_size, dtype=jnp.int32)

    # Force the Pallas path (the auto heuristic would fall back to jnp.take at
    # this tiny size, per the perf review).
    out = code_decoder_inputs(token_ids, embed_table, pos_table, use_pallas=True)
    out = jax.block_until_ready(out)

    # Pure-JAX reference: embed -> cat context zeros -> transpose -> + pos embed.
    emb = jnp.take(embed_table, token_ids, axis=0)
    ref = jnp.concatenate([jnp.zeros((batch, 1, d_model), jnp.float32), emb], axis=1)
    ref = jnp.transpose(ref, (1, 0, 2)) + pos_table[: seq + 1][:, None, :]

    assert out.shape == (seq + 1, batch, d_model), out.shape
    assert jnp.allclose(out, ref, atol=1e-5, rtol=1e-5), \
        "Pallas decoder_inputs mismatch vs reference"

    print("KERNEL_OK")
</pallas_src>

<mosaic_0001>
module attributes {stable_mosaic.version = 11 : i64} {
  func.func @_embed_pos_kernel(%arg0: i32, %arg1: memref<16xi32, #tpu.memory_space<smem>>, %arg2: memref<16xi32, #tpu.memory_space<smem>>, %arg3: memref<520x128xf32, #tpu.memory_space<vmem>>, %arg4: memref<8x128xf32, #tpu.memory_space<vmem>>, %arg5: memref<16x128xf32, #tpu.memory_space<vmem>>) attributes {dimension_semantics = [#tpu.dimension_semantics<parallel>], iteration_bounds = array<i64: 1>, scalar_prefetch = 2 : i64, scratch_operands = 0 : i64, tpu.core_type = #tpu.core_type<tc>, window_params = [{pipeline_mode = #tpu.pipeline_mode<synchronous>, transform_indices = @transform_0, window_bounds = array<i64: 520, 128>}, {pipeline_mode = #tpu.pipeline_mode<synchronous>, transform_indices = @transform_1, window_bounds = array<i64: 8, 128>}, {transform_indices = @transform_2, window_bounds = array<i64: 16, 128>}]} {
    %c16_i32 = arith.constant 16 : i32
    %0 = arith.muli %arg0, %c16_i32 : i32
    %c0_i32 = arith.constant 0 : i32
    %1 = arith.addi %0, %c0_i32 : i32
    %2 = arith.index_cast %1 : i32 to index
    %3 = memref.load %arg1[%2] : memref<16xi32, #tpu.memory_space<smem>>
    %4 = arith.addi %0, %c0_i32 : i32
    %5 = arith.index_cast %4 : i32 to index
    %6 = memref.load %arg2[%5] : memref<16xi32, #tpu.memory_space<smem>>
    %7 = arith.index_cast %3 : i32 to index
    %c0 = arith.constant 0 : index
    %8 = vector.load %arg3[%7, %c0] : memref<520x128xf32, #tpu.memory_space<vmem>>, vector<1x128xf32>
    %9 = arith.index_cast %6 : i32 to index
    %c0_0 = arith.constant 0 : index
    %10 = vector.load %arg4[%9, %c0_0] : memref<8x128xf32, #tpu.memory_space<vmem>>, vector<1x128xf32>
    %11 = arith.addf %8, %10 : vector<1x128xf32>
    %12 = arith.index_cast %c0_i32 : i32 to index
    %c0_1 = arith.constant 0 : index
    %13 = vector.load %arg5[%12, %c0_1] : memref<16x128xf32, #tpu.memory_space<vmem>>, vector<1x128xf32>
    tpu.vector_store %arg5[%12, %c0_1], %11 {strides = array<i32>} : memref<16x128xf32, #tpu.memory_space<vmem>>, vector<1x128xf32>,
    %c1_i32 = arith.constant 1 : i32
    %14 = arith.addi %0, %c1_i32 : i32
    %15 = arith.index_cast %14 : i32 to index
    %16 = memref.load %arg1[%15] : memref<16xi32, #tpu.memory_space<smem>>
    %17 = arith.addi %0, %c1_i32 : i32
    %18 = arith.index_cast %17 : i32 to index
    %19 = memref.load %arg2[%18] : memref<16xi32, #tpu.memory_space<smem>>
    %20 = arith.index_cast %16 : i32 to index
    %c0_2 = arith.constant 0 : index
    %21 = vector.load %arg3[%20, %c0_2] : memref<520x128xf32, #tpu.memory_space<vmem>>, vector<1x128xf32>
    %22 = arith.index_cast %19 : i32 to index
    %c0_3 = arith.constant 0 : index
    %23 = vector.load %arg4[%22, %c0_3] : memref<8x128xf32, #tpu.memory_space<vmem>>, vector<1x128xf32>
    %24 = arith.addf %21, %23 : vector<1x128xf32>
    %25 = arith.index_cast %c1_i32 : i32 to index
    %c0_4 = arith.constant 0 : index
    %26 = vector.load %arg5[%25, %c0_4] : memref<16x128xf32, #tpu.memory_space<vmem>>, vector<1x128xf32>
    tpu.vector_store %arg5[%25, %c0_4], %24 {strides = array<i32>} : memref<16x128xf32, #tpu.memory_space<vmem>>, vector<1x128xf32>,
    %c2_i32 = arith.constant 2 : i32
    %27 = arith.addi %0, %c2_i32 : i32
    %28 = arith.index_cast %27 : i32 to index
    %29 = memref.load %arg1[%28] : memref<16xi32, #tpu.memory_space<smem>>
    %30 = arith.addi %0, %c2_i32 : i32
    %31 = arith.index_cast %30 : i32 to index
    %32 = memref.load %arg2[%31] : memref<16xi32, #tpu.memory_space<smem>>
    %33 = arith.index_cast %29 : i32 to index
    %c0_5 = arith.constant 0 : index
    %34 = vector.load %arg3[%33, %c0_5] : memref<520x128xf32, #tpu.memory_space<vmem>>, vector<1x128xf32>
    %35 = arith.index_cast %32 : i32 to index
    %c0_6 = arith.constant 0 : index
    %36 = vector.load %arg4[%35, %c0_6] : memref<8x128xf32, #tpu.memory_space<vmem>>, vector<1x128xf32>
    %37 = arith.addf %34, %36 : vector<1x128xf32>
    %38 = arith.index_cast %c2_i32 : i32 to index
    %c0_7 = arith.constant 0 : index
    %39 = vector.load %arg5[%38, %c0_7] : memref<16x128xf32, #tpu.memory_space<vmem>>, vector<1x128xf32>
    tpu.vector_store %arg5[%38, %c0_7], %37 {strides = array<i32>} : memref<16x128xf32, #tpu.memory_space<vmem>>, vector<1x128xf32>,
    %c3_i32 = arith.constant 3 : i32
    %40 = arith.addi %0, %c3_i32 : i32
    %41 = arith.index_cast %40 : i32 to index
    %42 = memref.load %arg1[%41] : memref<16xi32, #tpu.memory_space<smem>>
    %43 = arith.addi %0, %c3_i32 : i32
    %44 = arith.index_cast %43 : i32 to index
    %45 = memref.load %arg2[%44] : memref<16xi32, #tpu.memory_space<smem>>
    %46 = arith.index_cast %42 : i32 to index
    %c0_8 = arith.constant 0 : index
    %47 = vector.load %arg3[%46, %c0_8] : memref<520x128xf32, #tpu.memory_space<vmem>>, vector<1x128xf32>
    %48 = arith.index_cast %45 : i32 to index
    %c0_9 = arith.constant 0 : index
    %49 = vector.load %arg4[%48, %c0_9] : memref<8x128xf32, #tpu.memory_space<vmem>>, vector<1x128xf32>
    %50 = arith.addf %47, %49 : vector<1x128xf32>
    %51 = arith.index_cast %c3_i32 : i32 to index
    %c0_10 = arith.constant 0 : index
    %52 = vector.load %arg5[%51, %c0_10] : memref<16x128xf32, #tpu.memory_space<vmem>>, vector<1x128xf32>
    tpu.vector_store %arg5[%51, %c0_10], %50 {strides = array<i32>} : memref<16x128xf32, #tpu.memory_space<vmem>>, vector<1x128xf32>,
    %c4_i32 = arith.constant 4 : i32
    %53 = arith.addi %0, %c4_i32 : i32
    %54 = arith.index_cast %53 : i32 to index
    %55 = memref.load %arg1[%54] : memref<16xi32, #tpu.memory_space<smem>>
    %56 = arith.addi %0, %c4_i32 : i32
    %57 = arith.index_cast %56 : i32 to index
    %58 = memref.load %arg2[%57] : memref<16xi32, #tpu.memory_space<smem>>
    %59 = arith.index_cast %55 : i32 to index
    %c0_11 = arith.constant 0 : index
    %60 = vector.load %arg3[%59, %c0_11] : memref<520x128xf32, #tpu.memory_space<vmem>>, vector<1x128xf32>
    %61 = arith.index_cast %58 : i32 to index
    %c0_12 = arith.constant 0 : index
    %62 = vector.load %arg4[%61, %c0_12] : memref<8x128xf32, #tpu.memory_space<vmem>>, vector<1x128xf32>
    %63 = arith.addf %60, %62 : vector<1x128xf32>
    %64 = arith.index_cast %c4_i32 : i32 to index
    %c0_13 = arith.constant 0 : index
    %65 = vector.load %arg5[%64, %c0_13] : memref<16x128xf32, #tpu.memory_space<vmem>>, vector<1x128xf32>
    tpu.vector_store %arg5[%64, %c0_13], %63 {strides = array<i32>} : memref<16x128xf32, #tpu.memory_space<vmem>>, vector<1x128xf32>,
    %c5_i32 = arith.constant 5 : i32
    %66 = arith.addi %0, %c5_i32 : i32
    %67 = arith.index_cast %66 : i32 to index
    %68 = memref.load %arg1[%67] : memref<16xi32, #tpu.memory_space<smem>>
    %69 = arith.addi %0, %c5_i32 : i32
    %70 = arith.index_cast %69 : i32 to index
    %71 = memref.load %arg2[%70] : memref<16xi32, #tpu.memory_space<smem>>
    %72 = arith.index_cast %68 : i32 to index
    %c0_14 = arith.constant 0 : index
    %73 = vector.load %arg3[%72, %c0_14] : memref<520x128xf32, #tpu.memory_space<vmem>>, vector<1x128xf32>
    %74 = arith.index_cast %71 : i32 to index
    %c0_15 = arith.constant 0 : index
    %75 = vector.load %arg4[%74, %c0_15] : memref<8x128xf32, #tpu.memory_space<vmem>>, vector<1x128xf32>
    %76 = arith.addf %73, %75 : vector<1x128xf32>
    %77 = arith.index_cast %c5_i32 : i32 to index
    %c0_16 = arith.constant 0 : index
    %78 = vector.load %arg5[%77, %c0_16] : memref<16x128xf32, #tpu.memory_space<vmem>>, vector<1x128xf32>
    tpu.vector_store %arg5[%77, %c0_16], %76 {strides = array<i32>} : memref<16x128xf32, #tpu.memory_space<vmem>>, vector<1x128xf32>,
    %c6_i32 = arith.constant 6 : i32
    %79 = arith.addi %0, %c6_i32 : i32
    %80 = arith.index_cast %79 : i32 to index
    %81 = memref.load %arg1[%80] : memref<16xi32, #tpu.memory_space<smem>>
    %82 = arith.addi %0, %c6_i32 : i32
    %83 = arith.index_cast %82 : i32 to index
    %84 = memref.load %arg2[%83] : memref<16xi32, #tpu.memory_space<smem>>
    %85 = arith.index_cast %81 : i32 to index
    %c0_17 = arith.constant 0 : index
    %86 = vector.load %arg3[%85, %c0_17] : memref<520x128xf32, #tpu.memory_space<vmem>>, vector<1x128xf32>
    %87 = arith.index_cast %84 : i32 to index
    %c0_18 = arith.constant 0 : index
    %88 = vector.load %arg4[%87, %c0_18] : memref<8x128xf32, #tpu.memory_space<vmem>>, vector<1x128xf32>
    %89 = arith.addf %86, %88 : vector<1x128xf32>
    %90 = arith.index_cast %c6_i32 : i32 to index
    %c0_19 = arith.constant 0 : index
    %91 = vector.load %arg5[%90, %c0_19] : memref<16x128xf32, #tpu.memory_space<vmem>>, vector<1x128xf32>
    tpu.vector_store %arg5[%90, %c0_19], %89 {strides = array<i32>} : memref<16x128xf32, #tpu.memory_space<vmem>>, vector<1x128xf32>,
    %c7_i32 = arith.constant 7 : i32
    %92 = arith.addi %0, %c7_i32 : i32
    %93 = arith.index_cast %92 : i32 to index
    %94 = memref.load %arg1[%93] : memref<16xi32, #tpu.memory_space<smem>>
    %95 = arith.addi %0, %c7_i32 : i32
    %96 = arith.index_cast %95 : i32 to index
    %97 = memref.load %arg2[%96] : memref<16xi32, #tpu.memory_space<smem>>
    %98 = arith.index_cast %94 : i32 to index
    %c0_20 = arith.constant 0 : index
    %99 = vector.load %arg3[%98, %c0_20] : memref<520x128xf32, #tpu.memory_space<vmem>>, vector<1x128xf32>
    %100 = arith.index_cast %97 : i32 to index
    %c0_21 = arith.constant 0 : index
    %101 = vector.load %arg4[%100, %c0_21] : memref<8x128xf32, #tpu.memory_space<vmem>>, vector<1x128xf32>
    %102 = arith.addf %99, %101 : vector<1x128xf32>
    %103 = arith.index_cast %c7_i32 : i32 to index
    %c0_22 = arith.constant 0 : index
    %104 = vector.load %arg5[%103, %c0_22] : memref<16x128xf32, #tpu.memory_space<vmem>>, vector<1x128xf32>
    tpu.vector_store %arg5[%103, %c0_22], %102 {strides = array<i32>} : memref<16x128xf32, #tpu.memory_space<vmem>>, vector<1x128xf32>,
    %c8_i32 = arith.constant 8 : i32
    %105 = arith.addi %0, %c8_i32 : i32
    %106 = arith.index_cast %105 : i32 to index
    %107 = memref.load %arg1[%106] : memref<16xi32, #tpu.memory_space<smem>>
    %108 = arith.addi %0, %c8_i32 : i32
    %109 = arith.index_cast %108 : i32 to index
    %110 = memref.load %arg2[%109] : memref<16xi32, #tpu.memory_space<smem>>
    %111 = arith.index_cast %107 : i32 to index
    %c0_23 = arith.constant 0 : index
    %112 = vector.load %arg3[%111, %c0_23] : memref<520x128xf32, #tpu.memory_space<vmem>>, vector<1x128xf32>
    %113 = arith.index_cast %110 : i32 to index
    %c0_24 = arith.constant 0 : index
    %114 = vector.load %arg4[%113, %c0_24] : memref<8x128xf32, #tpu.memory_space<vmem>>, vector<1x128xf32>
    %115 = arith.addf %112, %114 : vector<1x128xf32>
    %116 = arith.index_cast %c8_i32 : i32 to index
    %c0_25 = arith.constant 0 : index
    %117 = vector.load %arg5[%116, %c0_25] : memref<16x128xf32, #tpu.memory_space<vmem>>, vector<1x128xf32>
    tpu.vector_store %arg5[%116, %c0_25], %115 {strides = array<i32>} : memref<16x128xf32, #tpu.memory_space<vmem>>, vector<1x128xf32>,
    %c9_i32 = arith.constant 9 : i32
    %118 = arith.addi %0, %c9_i32 : i32
    %119 = arith.index_cast %118 : i32 to index
    %120 = memref.load %arg1[%119] : memref<16xi32, #tpu.memory_space<smem>>
    %121 = arith.addi %0, %c9_i32 : i32
    %122 = arith.index_cast %121 : i32 to index
    %123 = memref.load %arg2[%122] : memref<16xi32, #tpu.memory_space<smem>>
    %124 = arith.index_cast %120 : i32 to index
    %c0_26 = arith.constant 0 : index
    %125 = vector.load %arg3[%124, %c0_26] : memref<520x128xf32, #tpu.memory_space<vmem>>, vector<1x128xf32>
    %126 = arith.index_cast %123 : i32 to index
    %c0_27 = arith.constant 0 : index
    %127 = vector.load %arg4[%126, %c0_27] : memref<8x128xf32, #tpu.memory_space<vmem>>, vector<1x128xf32>
    %128 = arith.addf %125, %127 : vector<1x128xf32>
    %129 = arith.index_cast %c9_i32 : i32 to index
    %c0_28 = arith.constant 0 : index
    %130 = vector.load %arg5[%129, %c0_28] : memref<16x128xf32, #tpu.memory_space<vmem>>, vector<1x128xf32>
    tpu.vector_store %arg5[%129, %c0_28], %128 {strides = array<i32>} : memref<16x128xf32, #tpu.memory_space<vmem>>, vector<1x128xf32>,
    %c10_i32 = arith.constant 10 : i32
    %131 = arith.addi %0, %c10_i32 : i32
    %132 = arith.index_cast %131 : i32 to index
    %133 = memref.load %arg1[%132] : memref<16xi32, #tpu.memory_space<smem>>
    %134 = arith.addi %0, %c10_i32 : i32
    %135 = arith.index_cast %134 : i32 to index
    %136 = memref.load %arg2[%135] : memref<16xi32, #tpu.memory_space<smem>>
    %137 = arith.index_cast %133 : i32 to index
    %c0_29 = arith.constant 0 : index
    %138 = vector.load %arg3[%137, %c0_29] : memref<520x128xf32, #tpu.memory_space<vmem>>, vector<1x128xf32>
    %139 = arith.index_cast %136 : i32 to index
    %c0_30 = arith.constant 0 : index
    %140 = vector.load %arg4[%139, %c0_30] : memref<8x128xf32, #tpu.memory_space<vmem>>, vector<1x128xf32>
    %141 = arith.addf %138, %140 : vector<1x128xf32>
    %142 = arith.index_cast %c10_i32 : i32 to index
    %c0_31 = arith.constant 0 : index
    %143 = vector.load %arg5[%142, %c0_31] : memref<16x128xf32, #tpu.memory_space<vmem>>, vector<1x128xf32>
    tpu.vector_store %arg5[%142, %c0_31], %141 {strides = array<i32>} : memref<16x128xf32, #tpu.memory_space<vmem>>, vector<1x128xf32>,
    %c11_i32 = arith.constant 11 : i32
    %144 = arith.addi %0, %c11_i32 : i32
    %145 = arith.index_cast %144 : i32 to index
    %146 = memref.load %arg1[%145] : memref<16xi32, #tpu.memory_space<smem>>
    %147 = arith.addi %0, %c11_i32 : i32
    %148 = arith.index_cast %147 : i32 to index
    %149 = memref.load %arg2[%148] : memref<16xi32, #tpu.memory_space<smem>>
    %150 = arith.index_cast %146 : i32 to index
    %c0_32 = arith.constant 0 : index
    %151 = vector.load %arg3[%150, %c0_32] : memref<520x128xf32, #tpu.memory_space<vmem>>, vector<1x128xf32>
    %152 = arith.index_cast %149 : i32 to index
    %c0_33 = arith.constant 0 : index
    %153 = vector.load %arg4[%152, %c0_33] : memref<8x128xf32, #tpu.memory_space<vmem>>, vector<1x128xf32>
    %154 = arith.addf %151, %153 : vector<1x128xf32>
    %155 = arith.index_cast %c11_i32 : i32 to index
    %c0_34 = arith.constant 0 : index
    %156 = vector.load %arg5[%155, %c0_34] : memref<16x128xf32, #tpu.memory_space<vmem>>, vector<1x128xf32>
    tpu.vector_store %arg5[%155, %c0_34], %154 {strides = array<i32>} : memref<16x128xf32, #tpu.memory_space<vmem>>, vector<1x128xf32>,
    %c12_i32 = arith.constant 12 : i32
    %157 = arith.addi %0, %c12_i32 : i32
    %158 = arith.index_cast %157 : i32 to index
    %159 = memref.load %arg1[%158] : memref<16xi32, #tpu.memory_space<smem>>
    %160 = arith.addi %0, %c12_i32 : i32
    %161 = arith.index_cast %160 : i32 to index
    %162 = memref.load %arg2[%161] : memref<16xi32, #tpu.memory_space<smem>>
    %163 = arith.index_cast %159 : i32 to index
    %c0_35 = arith.constant 0 : index
    %164 = vector.load %arg3[%163, %c0_35] : memref<520x128xf32, #tpu.memory_space<vmem>>, vector<1x128xf32>
    %165 = arith.index_cast %162 : i32 to index
    %c0_36 = arith.constant 0 : index
    %166 = vector.load %arg4[%165, %c0_36] : memref<8x128xf32, #tpu.memory_space<vmem>>, vector<1x128xf32>
    %167 = arith.addf %164, %166 : vector<1x128xf32>
    %168 = arith.index_cast %c12_i32 : i32 to index
    %c0_37 = arith.constant 0 : index
    %169 = vector.load %arg5[%168, %c0_37] : memref<16x128xf32, #tpu.memory_space<vmem>>, vector<1x128xf32>
    tpu.vector_store %arg5[%168, %c0_37], %167 {strides = array<i32>} : memref<16x128xf32, #tpu.memory_space<vmem>>, vector<1x128xf32>,
    %c13_i32 = arith.constant 13 : i32
    %170 = arith.addi %0, %c13_i32 : i32
    %171 = arith.index_cast %170 : i32 to index
    %172 = memref.load %arg1[%171] : memref<16xi32, #tpu.memory_space<smem>>
    %173 = arith.addi %0, %c13_i32 : i32
    %174 = arith.index_cast %173 : i32 to index
    %175 = memref.load %arg2[%174] : memref<16xi32, #tpu.memory_space<smem>>
    %176 = arith.index_cast %172 : i32 to index
    %c0_38 = arith.constant 0 : index
    %177 = vector.load %arg3[%176, %c0_38] : memref<520x128xf32, #tpu.memory_space<vmem>>, vector<1x128xf32>
    %178 = arith.index_cast %175 : i32 to index
    %c0_39 = arith.constant 0 : index
    %179 = vector.load %arg4[%178, %c0_39] : memref<8x128xf32, #tpu.memory_space<vmem>>, vector<1x128xf32>
    %180 = arith.addf %177, %179 : vector<1x128xf32>
    %181 = arith.index_cast %c13_i32 : i32 to index
    %c0_40 = arith.constant 0 : index
    %182 = vector.load %arg5[%181, %c0_40] : memref<16x128xf32, #tpu.memory_space<vmem>>, vector<1x128xf32>
    tpu.vector_store %arg5[%181, %c0_40], %180 {strides = array<i32>} : memref<16x128xf32, #tpu.memory_space<vmem>>, vector<1x128xf32>,
    %c14_i32 = arith.constant 14 : i32
    %183 = arith.addi %0, %c14_i32 : i32
    %184 = arith.index_cast %183 : i32 to index
    %185 = memref.load %arg1[%184] : memref<16xi32, #tpu.memory_space<smem>>
    %186 = arith.addi %0, %c14_i32 : i32
    %187 = arith.index_cast %186 : i32 to index
    %188 = memref.load %arg2[%187] : memref<16xi32, #tpu.memory_space<smem>>
    %189 = arith.index_cast %185 : i32 to index
    %c0_41 = arith.constant 0 : index
    %190 = vector.load %arg3[%189, %c0_41] : memref<520x128xf32, #tpu.memory_space<vmem>>, vector<1x128xf32>
    %191 = arith.index_cast %188 : i32 to index
    %c0_42 = arith.constant 0 : index
    %192 = vector.load %arg4[%191, %c0_42] : memref<8x128xf32, #tpu.memory_space<vmem>>, vector<1x128xf32>
    %193 = arith.addf %190, %192 : vector<1x128xf32>
    %194 = arith.index_cast %c14_i32 : i32 to index
    %c0_43 = arith.constant 0 : index
    %195 = vector.load %arg5[%194, %c0_43] : memref<16x128xf32, #tpu.memory_space<vmem>>, vector<1x128xf32>
    tpu.vector_store %arg5[%194, %c0_43], %193 {strides = array<i32>} : memref<16x128xf32, #tpu.memory_space<vmem>>, vector<1x128xf32>,
    %c15_i32 = arith.constant 15 : i32
    %196 = arith.addi %0, %c15_i32 : i32
    %197 = arith.index_cast %196 : i32 to index
    %198 = memref.load %arg1[%197] : memref<16xi32, #tpu.memory_space<smem>>
    %199 = arith.addi %0, %c15_i32 : i32
    %200 = arith.index_cast %199 : i32 to index
    %201 = memref.load %arg2[%200] : memref<16xi32, #tpu.memory_space<smem>>
    %202 = arith.index_cast %198 : i32 to index
    %c0_44 = arith.constant 0 : index
    %203 = vector.load %arg3[%202, %c0_44] : memref<520x128xf32, #tpu.memory_space<vmem>>, vector<1x128xf32>
    %204 = arith.index_cast %201 : i32 to index
    %c0_45 = arith.constant 0 : index
    %205 = vector.load %arg4[%204, %c0_45] : memref<8x128xf32, #tpu.memory_space<vmem>>, vector<1x128xf32>
    %206 = arith.addf %203, %205 : vector<1x128xf32>
    %207 = arith.index_cast %c15_i32 : i32 to index
    %c0_46 = arith.constant 0 : index
    %208 = vector.load %arg5[%207, %c0_46] : memref<16x128xf32, #tpu.memory_space<vmem>>, vector<1x128xf32>
    tpu.vector_store %arg5[%207, %c0_46], %206 {strides = array<i32>} : memref<16x128xf32, #tpu.memory_space<vmem>>, vector<1x128xf32>,
    %c16_i32_47 = arith.constant 16 : i32
    return
  }
  func.func @transform_0(%arg0: i32, %arg1: memref<16xi32, #tpu.memory_space<smem>>, %arg2: memref<16xi32, #tpu.memory_space<smem>>) -> (i32, i32) {
    %c0_i32 = arith.constant 0 : i32
    %c0_i32_0 = arith.constant 0 : i32
    %c0_i32_1 = arith.constant 0 : i32
    return %c0_i32, %c0_i32_0 : i32, i32
  }
  func.func @transform_1(%arg0: i32, %arg1: memref<16xi32, #tpu.memory_space<smem>>, %arg2: memref<16xi32, #tpu.memory_space<smem>>) -> (i32, i32) {
    %c0_i32 = arith.constant 0 : i32
    %c0_i32_0 = arith.constant 0 : i32
    %c0_i32_1 = arith.constant 0 : i32
    return %c0_i32, %c0_i32_0 : i32, i32
  }
  func.func @transform_2(%arg0: i32, %arg1: memref<16xi32, #tpu.memory_space<smem>>, %arg2: memref<16xi32, #tpu.memory_space<smem>>) -> (i32, i32) {
    %c0_i32 = arith.constant 0 : i32
    %c0_i32_0 = arith.constant 0 : i32
    return %arg0, %c0_i32 : i32, i32
  }
}

</mosaic_0001>

<llo_original>
// kernel: tpu_custom_call.1
$region0: #{tpu_custom_call.1}
  #allocation0 [shape = 'u32[]', space=smem, size = 0x4, offset = 0x4, fixed_abs, tag = 'smem constant byte address 0x4 - core index']
  #allocation1 [shape = 'u32[144,128]{1,0:T(1,128)}', space=vmem, size = 0x12000, scoped, tag = 'internal scratch']
  #allocation2 [shape = 's32[1]{0}', space=sflag, size = 0x4, scoped, tag = 'scoped memory for tpu_custom_call.1']
  #allocation3 [shape = 'u8[512]{0}', space=smem, size = 0x200, scoped, tag = 'prefetched SMEM operand 0']
  #allocation4 [shape = 'u8[512]{0}', space=smem, size = 0x200, scoped, tag = 'prefetched SMEM operand 1']
  %s0 = inlined_call_operand.hbm [shape: s32[16], index: 0, kind: input, shape index: {}]
  %s1 = inlined_call_operand.vmem [shape: s32[16], index: 1, kind: input, shape index: {}]
  %s2 = inlined_call_operand.hbm [shape: f32[520,128], index: 2, kind: input, shape index: {}]
  %s3 = inlined_call_operand.vmem [shape: f32[8,128], index: 3, kind: input, shape index: {}]
  %s4 = inlined_call_operand.hbm [shape: f32[16,128], index: 4, kind: output, shape index: {}]
  %s5 = sld [smem:[#allocation0]]
  $region22: #{tpu_custom_call.1} parent=0
    _
  %s7 = ssub.s32 1, %s5
  %s8 = scalar_select 0, %s7, %s5
  %10 = dma.hbm_to_smem %s0, 16, [#allocation3], [#allocation2]
  %s11 = sshll.u32 %s1, 4
  %s12 = int_to_ptr.vmem [resolvable:$true] %s11
  %14 = dma.vmem_to_smem %s12, 16, [#allocation4], [#allocation2]
  %15 = dma.done [#allocation2], 32
  %16 = sfence
  $region1: #{tpu_custom_call.1} parent=0
    #allocation5 [shape = 'u8[266240]{0}', space=vmem, size = 0x41000, scoped, tag = 'input window, operand 2, single buffered']
    #allocation6 [shape = 's32[1]{0}', space=sflag, size = 0x4, scoped, tag = 'scoped memory for tpu_custom_call.1']
    #allocation7 [shape = 's32[1]{0}', space=sflag, size = 0x4, scoped, tag = 'scoped memory for tpu_custom_call.1']
    #allocation8 [shape = 'u8[8192]{0}', space=vmem, size = 0x2000, scoped, tag = 'output window, operand 0, single buffered']
    %17 = vsyncpa [#allocation6], 0
    %18 = vsyncpa [#allocation7], 0
    // Predicated region
    $region2: #{tpu_custom_call.1} parent=1 // pred_check
      _
    $region3: #{tpu_custom_call.1} parent=1 // pred_check_branch
      %20 = sbr.rel (0) target = $region5
    $region4: #{tpu_custom_call.1} parent=1 // pred_region
      %s22 = ssub.s32 8320, 8320
      %23 = vsyncadd [#allocation6], %s22
      %s24 = sshll.u32 [#allocation5], 4
      %s25 = int_to_ptr.vmem [resolvable:$true] %s24
      %30 = dma.hbm_to_vmem [thread:$0]  %s2, 8320, %s25, [#allocation6], 128, 128, 8
    $region5: #{tpu_custom_call.1} parent=1 // pred_fallthru
      _
    // Predicated region
    $region6: #{tpu_custom_call.1} parent=1 // pred_check
      _
    $region7: #{tpu_custom_call.1} parent=1 // pred_check_branch
      %32 = sbr.rel (0) target = $region9
    $region8: #{tpu_custom_call.1} parent=1 // pred_region
      _
    $region9: #{tpu_custom_call.1} parent=1 // pred_fallthru
      _
    // Predicated region
    $region10: #{tpu_custom_call.1} parent=1 // pred_check
      _
    $region11: #{tpu_custom_call.1} parent=1 // pred_check_branch
      %34 = sbr.rel (0) target = $region13
    $region12: #{tpu_custom_call.1} parent=1 // pred_region
      %35 = dma.done [#allocation6], 8320
    $region13: #{tpu_custom_call.1} parent=1 // pred_fallthru
      _
    %s36 = smul.u32 0, 16
    %s37 = sld [smem:[#allocation3 + %s36]]
    %s38 = sld [smem:[#allocation4 + %s36]]
    %s39 = scalar_lea.vmem [#allocation5], %s37
    %v40 = vld [vmem:[%s39] sm:$0x1]
    %s41 = scalar_lea.vmem %s3, %s38
    %v42 = vld [vmem:[%s41] sm:$0x1]
    %v43 = vadd.f32 %v40, %v42
    %44 = vst [vmem:[#allocation8] sm:$0x1] %v43
    %s45 = sadd.s32 %s36, 1
    %s46 = sld [smem:[#allocation3 + %s45]]
    %s47 = sld [smem:[#allocation4 + %s45]]
    %s48 = scalar_lea.vmem [#allocation5], %s46
    %v49 = vld [vmem:[%s48] sm:$0x1]
    %s50 = scalar_lea.vmem %s3, %s47
    %v51 = vld [vmem:[%s50] sm:$0x1]
    %v52 = vadd.f32 %v49, %v51
    %53 = vst [vmem:[#allocation8 + $0x1] sm:$0x1] %v52
    %s54 = sadd.s32 %s36, 2
    %s55 = sld [smem:[#allocation3 + %s54]]
    %s56 = sld [smem:[#allocation4 + %s54]]
    %s57 = scalar_lea.vmem [#allocation5], %s55
    %v58 = vld [vmem:[%s57] sm:$0x1]
    %s59 = scalar_lea.vmem %s3, %s56
    %v60 = vld [vmem:[%s59] sm:$0x1]
    %v61 = vadd.f32 %v58, %v60
    %62 = vst [vmem:[#allocation8 + $0x2] sm:$0x1] %v61
    %s63 = sadd.s32 %s36, 3
    %s64 = sld [smem:[#allocation3 + %s63]]
    %s65 = sld [smem:[#allocation4 + %s63]]
    %s66 = scalar_lea.vmem [#allocation5], %s64
    %v67 = vld [vmem:[%s66] sm:$0x1]
    %s68 = scalar_lea.vmem %s3, %s65
    %v69 = vld [vmem:[%s68] sm:$0x1]
    %v70 = vadd.f32 %v67, %v69
    %71 = vst [vmem:[#allocation8 + $0x3] sm:$0x1] %v70
    %s72 = sadd.s32 %s36, 4
    %s73 = sld [smem:[#allocation3 + %s72]]
    %s74 = sld [smem:[#allocation4 + %s72]]
    %s75 = scalar_lea.vmem [#allocation5], %s73
    %v76 = vld [vmem:[%s75] sm:$0x1]
    %s77 = scalar_lea.vmem %s3, %s74
    %v78 = vld [vmem:[%s77] sm:$0x1]
    %v79 = vadd.f32 %v76, %v78
    %80 = vst [vmem:[#allocation8 + $0x4] sm:$0x1] %v79
    %s81 = sadd.s32 %s36, 5
    %s82 = sld [smem:[#allocation3 + %s81]]
    %s83 = sld [smem:[#allocation4 + %s81]]
    %s84 = scalar_lea.vmem [#allocation5], %s82
    %v85 = vld [vmem:[%s84] sm:$0x1]
    %s86 = scalar_lea.vmem %s3, %s83
    %v87 = vld [vmem:[%s86] sm:$0x1]
    %v88 = vadd.f32 %v85, %v87
    %89 = vst [vmem:[#allocation8 + $0x5] sm:$0x1] %v88
    %s90 = sadd.s32 %s36, 6
    %s91 = sld [smem:[#allocation3 + %s90]]
    %s92 = sld [smem:[#allocation4 + %s90]]
    %s93 = scalar_lea.vmem [#allocation5], %s91
    %v94 = vld [vmem:[%s93] sm:$0x1]
    %s95 = scalar_lea.vmem %s3, %s92
    %v96 = vld [vmem:[%s95] sm:$0x1]
    %v97 = vadd.f32 %v94, %v96
    %98 = vst [vmem:[#allocation8 + $0x6] sm:$0x1] %v97
    %s99 = sadd.s32 %s36, 7
    %s100 = sld [smem:[#allocation3 + %s99]]
    %s101 = sld [smem:[#allocation4 + %s99]]
    %s102 = scalar_lea.vmem [#allocation5], %s100
    %v103 = vld [vmem:[%s102] sm:$0x1]
    %s104 = scalar_lea.vmem %s3, %s101
    %v105 = vld [vmem:[%s104] sm:$0x1]
    %v106 = vadd.f32 %v103, %v105
    %107 = vst [vmem:[#allocation8 + $0x7] sm:$0x1] %v106
    %s108 = sadd.s32 %s36, 8
    %s109 = sld [smem:[#allocation3 + %s108]]
    %s110 = sld [smem:[#allocation4 + %s108]]
    %s111 = scalar_lea.vmem [#allocation5], %s109
    %v112 = vld [vmem:[%s111] sm:$0x1]
    %s113 = scalar_lea.vmem %s3, %s110
    %v114 = vld [vmem:[%s113] sm:$0x1]
    %v115 = vadd.f32 %v112, %v114
    %116 = vst [vmem:[#allocation8 + $0x8] sm:$0x1] %v115
    %s117 = sadd.s32 %s36, 9
    %s118 = sld [smem:[#allocation3 + %s117]]
    %s119 = sld [smem:[#allocation4 + %s117]]
    %s120 = scalar_lea.vmem [#allocation5], %s118
    %v121 = vld [vmem:[%s120] sm:$0x1]
    %s122 = scalar_lea.vmem %s3, %s119
    %v123 = vld [vmem:[%s122] sm:$0x1]
    %v124 = vadd.f32 %v121, %v123
    %125 = vst [vmem:[#allocation8 + $0x9] sm:$0x1] %v124
    %s126 = sadd.s32 %s36, 10
    %s127 = sld [smem:[#allocation3 + %s126]]
    %s128 = sld [smem:[#allocation4 + %s126]]
    %s129 = scalar_lea.vmem [#allocation5], %s127
    %v130 = vld [vmem:[%s129] sm:$0x1]
    %s131 = scalar_lea.vmem %s3, %s128
    %v132 = vld [vmem:[%s131] sm:$0x1]
    %v133 = vadd.f32 %v130, %v132
    %134 = vst [vmem:[#allocation8 + $0xa] sm:$0x1] %v133
    %s135 = sadd.s32 %s36, 11
    %s136 = sld [smem:[#allocation3 + %s135]]
    %s137 = sld [smem:[#allocation4 + %s135]]
    %s138 = scalar_lea.vmem [#allocation5], %s136
    %v139 = vld [vmem:[%s138] sm:$0x1]
    %s140 = scalar_lea.vmem %s3, %s137
    %v141 = vld [vmem:[%s140] sm:$0x1]
    %v142 = vadd.f32 %v139, %v141
    %143 = vst [vmem:[#allocation8 + $0xb] sm:$0x1] %v142
    %s144 = sadd.s32 %s36, 12
    %s145 = sld [smem:[#allocation3 + %s144]]
    %s146 = sld [smem:[#allocation4 + %s144]]
    %s147 = scalar_lea.vmem [#allocation5], %s145
    %v148 = vld [vmem:[%s147] sm:$0x1]
    %s149 = scalar_lea.vmem %s3, %s146
    %v150 = vld [vmem:[%s149] sm:$0x1]
    %v151 = vadd.f32 %v148, %v150
    %152 = vst [vmem:[#allocation8 + $0xc] sm:$0x1] %v151
    %s153 = sadd.s32 %s36, 13
    %s154 = sld [smem:[#allocation3 + %s153]]
    %s155 = sld [smem:[#allocation4 + %s153]]
    %s156 = scalar_lea.vmem [#allocation5], %s154
    %v157 = vld [vmem:[%s156] sm:$0x1]
    %s158 = scalar_lea.vmem %s3, %s155
    %v159 = vld [vmem:[%s158] sm:$0x1]
    %v160 = vadd.f32 %v157, %v159
    %161 = vst [vmem:[#allocation8 + $0xd] sm:$0x1] %v160
    %s162 = sadd.s32 %s36, 14
    %s163 = sld [smem:[#allocation3 + %s162]]
    %s164 = sld [smem:[#allocation4 + %s162]]
    %s165 = scalar_lea.vmem [#allocation5], %s163
    %v166 = vld [vmem:[%s165] sm:$0x1]
    %s167 = scalar_lea.vmem %s3, %s164
    %v168 = vld [vmem:[%s167] sm:$0x1]
    %v169 = vadd.f32 %v166, %v168
    %170 = vst [vmem:[#allocation8 + $0xe] sm:$0x1] %v169
    %s171 = sadd.s32 %s36, 15
    %s172 = sld [smem:[#allocation3 + %s171]]
    %s173 = sld [smem:[#allocation4 + %s171]]
    %s174 = scalar_lea.vmem [#allocation5], %s172
    %v175 = vld [vmem:[%s174] sm:$0x1]
    %s176 = scalar_lea.vmem %s3, %s173
    %v177 = vld [vmem:[%s176] sm:$0x1]
    %v178 = vadd.f32 %v175, %v177
    %179 = vst [vmem:[#allocation8 + $0xf] sm:$0x1] %v178
    // Predicated region
    $region14: #{tpu_custom_call.1} parent=1 // pred_check
      _
    $region15: #{tpu_custom_call.1} parent=1 // pred_check_branch
      %181 = sbr.rel (0) target = $region17
    $region16: #{tpu_custom_call.1} parent=1 // pred_region
      %s183 = ssub.s32 256, 256
      %184 = vsyncadd [#allocation7], %s183
      %s185 = sshll.u32 [#allocation8], 4
      %s186 = int_to_ptr.vmem [resolvable:$true] %s185
      %191 = dma.vmem_to_hbm [thread:$0]  %s186, 256, %s4, [#allocation7], 128, 128, 8
    $region17: #{tpu_custom_call.1} parent=1 // pred_fallthru
      _
    // Predicated region
    $region18: #{tpu_custom_call.1} parent=1 // pred_check
      _
    $region19: #{tpu_custom_call.1} parent=1 // pred_check_branch
      %193 = sbr.rel (0) target = $region21
    $region20: #{tpu_custom_call.1} parent=1 // pred_region
      %194 = dma.done [#allocation7], 256
    $region21: #{tpu_custom_call.1} parent=1 // pred_fallthru
      _
    %195 = vsyncpa [#allocation6], 1
    %196 = vsyncpa [#allocation7], 1

</llo_original>
